<compile_context>
chip_gen: v6e
topology: v6e:2x2x1
jax: 0.10.0
libtpu: 0.0.40
codegen_flags: <defaults>
</compile_context>

<pallas_src>
import functools

import jax
import jax.numpy as jnp
from jax.experimental import pallas as pl
from jax.experimental.pallas import tpu as pltpu

H1 = 256            # hidden-1 width (nn.Linear(num_states, 256))
H2 = 64             # logical hidden-2 width
H2P = 128           # hidden-2 padded to a full lane tile
TILE_B = 2048       # max batch tile for large (replay-buffer) batches
SINGLE_BLOCK_MAX = 256   # below this, run the whole batch as one block


def _round_up(x, m):
    return ((x + m - 1) // m) * m


def _pad2(x, rows, cols):
    r, c = x.shape
    return jnp.pad(x, ((0, rows - r), (0, cols - c)))


def _qnet_kernel(x_ref, w1_ref, b1_ref, w2_ref, b2_ref, w3_ref, b3_ref, o_ref):
    # Layer 1 in f32: [tB, S] @ [S, 256] (K is tiny; keeps input precision).
    h1 = jnp.dot(x_ref[...], w1_ref[...], preferred_element_type=jnp.float32)
    h1 = jnp.maximum(h1 + b1_ref[...], 0.0)
    # Layer 2: bf16 operands, f32 accumulate: [tB, 256] @ [256, 128].
    h2 = jnp.dot(h1.astype(jnp.bfloat16), w2_ref[...],
                 preferred_element_type=jnp.float32)
    h2 = jnp.maximum(h2 + b2_ref[...], 0.0)
    # Layer 3: bf16 operands, f32 accumulate: [tB, 128] @ [128, A]; A un-padded.
    out = jnp.dot(h2.astype(jnp.bfloat16), w3_ref[...],
                  preferred_element_type=jnp.float32)
    o_ref[...] = (out + b3_ref[...]).astype(o_ref.dtype)


def prepare_params(params):
    """Pad / transpose / cast parameters ONCE (outside the per-step forward).

    Weights are stored [in, out] (PyTorch weight.T). w1 stays f32 (layer 1 runs
    in f32); w2/w3 are zero-padded on the hidden-2 axis (64 -> 128) and cast to
    bf16 (MXU operands). Biases stay f32 row vectors; b3 is NOT lane-padded.
    """
    num_actions = params["w3"].shape[1]
    w1 = params["w1"].astype(jnp.float32)                                  # (S, 256) f32
    b1 = params["b1"].astype(jnp.float32).reshape(1, H1)                   # (1, 256)
    w2 = _pad2(params["w2"].astype(jnp.float32), H1, H2P).astype(jnp.bfloat16)   # (256, 128)
    b2 = _pad2(params["b2"].astype(jnp.float32).reshape(1, H2), 1, H2P)    # (1, 128)
    w3 = jnp.pad(params["w3"].astype(jnp.float32),
                 ((0, H2P - H2), (0, 0))).astype(jnp.bfloat16)             # (128, A)
    b3 = params["b3"].astype(jnp.float32).reshape(1, num_actions)          # (1, A)
    return {"w1": w1, "b1": b1, "w2": w2, "b2": b2, "w3": w3, "b3": b3}


@jax.jit
def qnetwork_forward(states, prepared):
    """states: [B, num_states] float32. Returns [B, num_actions] float32."""
    w1, b1 = prepared["w1"], prepared["b1"]
    w2, b2 = prepared["w2"], prepared["b2"]
    w3, b3 = prepared["w3"], prepared["b3"]

    B, S = states.shape
    A = w3.shape[1]

    # Batch tiling:
    #  * acting path (B <= 256): single full-array block, no wrapper pad/slice.
    #  * replay path: >= 2 grid steps (v7x megacore), tile capped at TILE_B;
    #    only a cheap batch-row pad when B isn't a multiple of the tile.
    if B <= SINGLE_BLOCK_MAX:
        tile_b = B
        Bp = B
    else:
        tile_b = min(TILE_B, _round_up(pl.cdiv(B, 2), 8))
        Bp = _round_up(B, tile_b)
    grid_b = Bp // tile_b

    x_in = states if Bp == B else jnp.pad(states, ((0, Bp - B), (0, 0)))

    out = pl.pallas_call(
        _qnet_kernel,
        out_shape=jax.ShapeDtypeStruct((Bp, A), jnp.float32),
        grid=(grid_b,),
        in_specs=[
            pl.BlockSpec((tile_b, S), lambda i: (i, 0)),   # x: streamed over batch (f32)
            pl.BlockSpec((S, H1), lambda i: (0, 0)),       # w1: VMEM resident (f32)
            pl.BlockSpec((1, H1), lambda i: (0, 0)),       # b1
            pl.BlockSpec((H1, H2P), lambda i: (0, 0)),     # w2: VMEM resident (bf16)
            pl.BlockSpec((1, H2P), lambda i: (0, 0)),      # b2
            pl.BlockSpec((H2P, A), lambda i: (0, 0)),      # w3: VMEM resident (bf16)
            pl.BlockSpec((1, A), lambda i: (0, 0)),        # b3 (un-padded)
        ],
        out_specs=pl.BlockSpec((tile_b, A), lambda i: (i, 0)),   # un-padded lane dim
        compiler_params=pltpu.CompilerParams(
            dimension_semantics=("parallel",),   # v7x: both TCs split the batch grid
        ),
    )(x_in, w1, b1, w2, b2, w3, b3)

    return out if Bp == B else out[:B]


def init_params(key, num_states, num_actions):
    """Deterministic synthetic init (PyTorch-style uniform fan-in scaling)."""
    def linear(key, fan_in, fan_out):
        kw, kb = jax.random.split(key)
        bound = 1.0 / jnp.sqrt(float(fan_in))
        w = jax.random.uniform(kw, (fan_in, fan_out), jnp.float32, -bound, bound)
        b = jax.random.uniform(kb, (fan_out,), jnp.float32, -bound, bound)
        return w, b

    k1, k2, k3 = jax.random.split(key, 3)
    w1, b1 = linear(k1, num_states, H1)
    w2, b2 = linear(k2, H1, H2)
    w3, b3 = linear(k3, H2, num_actions)
    return {"w1": w1, "b1": b1, "w2": w2, "b2": b2, "w3": w3, "b3": b3}


def reference_forward_f32(states, params):
    h1 = jnp.maximum(states @ params["w1"] + params["b1"], 0.0)
    h2 = jnp.maximum(h1 @ params["w2"] + params["b2"], 0.0)
    return h2 @ params["w3"] + params["b3"]


def reference_forward_matched(states, params):
    """Same precision scheme as the kernel: layer 1 f32, layers 2/3 bf16 operands."""
    bf = jnp.bfloat16
    h1 = jnp.maximum(states @ params["w1"] + params["b1"], 0.0)
    h2 = jnp.dot(h1.astype(bf), params["w2"].astype(bf),
                 preferred_element_type=jnp.float32) + params["b2"]
    h2 = jnp.maximum(h2, 0.0)
    return jnp.dot(h2.astype(bf), params["w3"].astype(bf),
                   preferred_element_type=jnp.float32) + params["b3"]


if __name__ == "__main__":
    num_states, num_actions = 8, 4
    key = jax.random.PRNGKey(0)
    k_params, k_x1, k_x2 = jax.random.split(key, 3)

    params = init_params(k_params, num_states, num_actions)
    prepared = prepare_params(params)   # done once, outside the forward

    # Small acting batch (single-block path: one pallas_call, no pad/slice ops).
    states_small = jax.random.normal(k_x1, (2, num_states), jnp.float32)
    out_small = jax.block_until_ready(qnetwork_forward(states_small, prepared))
    assert out_small.shape == (2, num_actions)
    ref_m = reference_forward_matched(states_small, params)
    ref_f = reference_forward_f32(states_small, params)
    assert jnp.allclose(out_small, ref_m, atol=1e-2, rtol=1e-2), "mismatch vs matched reference"
    assert jnp.allclose(out_small, ref_f, atol=2e-2, rtol=2e-2), "mismatch vs f32 reference"

    # Larger replay-style batch (exercises the batch grid, grid_b >= 2, row pad).
    states_big = jax.random.normal(k_x2, (600, num_states), jnp.float32)
    out_big = jax.block_until_ready(qnetwork_forward(states_big, prepared))
    assert out_big.shape == (600, num_actions)
    ref_m_big = reference_forward_matched(states_big, params)
    ref_f_big = reference_forward_f32(states_big, params)
    assert jnp.allclose(out_big, ref_m_big, atol=1e-2, rtol=1e-2), "mismatch (gridded path)"
    assert jnp.allclose(out_big, ref_f_big, atol=2e-2, rtol=2e-2), "mismatch vs f32 (gridded path)"

    print("KERNEL_OK")
</pallas_src>

<mosaic_0001>
module attributes {stable_mosaic.version = 11 : i64} {
  func.func @_qnet_kernel(%arg0: i32, %arg1: memref<2x8xf32, #tpu.memory_space<vmem>>, %arg2: memref<8x256xf32, #tpu.memory_space<vmem>>, %arg3: memref<1x256xf32, #tpu.memory_space<vmem>>, %arg4: memref<256x128xbf16, #tpu.memory_space<vmem>>, %arg5: memref<1x128xf32, #tpu.memory_space<vmem>>, %arg6: memref<128x4xbf16, #tpu.memory_space<vmem>>, %arg7: memref<1x4xf32, #tpu.memory_space<vmem>>, %arg8: memref<2x4xf32, #tpu.memory_space<vmem>>) attributes {dimension_semantics = [#tpu.dimension_semantics<parallel>], iteration_bounds = array<i64: 1>, scalar_prefetch = 0 : i64, scratch_operands = 0 : i64, tpu.core_type = #tpu.core_type<tc>, window_params = [{transform_indices = @transform_0, window_bounds = array<i64: 2, 8>}, {pipeline_mode = #tpu.pipeline_mode<synchronous>, transform_indices = @transform_1, window_bounds = array<i64: 8, 256>}, {pipeline_mode = #tpu.pipeline_mode<synchronous>, transform_indices = @transform_2, window_bounds = array<i64: 1, 256>}, {pipeline_mode = #tpu.pipeline_mode<synchronous>, transform_indices = @transform_3, window_bounds = array<i64: 256, 128>}, {pipeline_mode = #tpu.pipeline_mode<synchronous>, transform_indices = @transform_4, window_bounds = array<i64: 1, 128>}, {pipeline_mode = #tpu.pipeline_mode<synchronous>, transform_indices = @transform_5, window_bounds = array<i64: 128, 4>}, {pipeline_mode = #tpu.pipeline_mode<synchronous>, transform_indices = @transform_6, window_bounds = array<i64: 1, 4>}, {transform_indices = @transform_7, window_bounds = array<i64: 2, 4>}]} {
    %c0 = arith.constant 0 : index
    %c0_0 = arith.constant 0 : index
    %0 = vector.load %arg1[%c0, %c0_0] : memref<2x8xf32, #tpu.memory_space<vmem>>, vector<2x8xf32>
    %c0_1 = arith.constant 0 : index
    %c0_2 = arith.constant 0 : index
    %1 = vector.load %arg2[%c0_1, %c0_2] : memref<8x256xf32, #tpu.memory_space<vmem>>, vector<8x256xf32>
    %cst = arith.constant dense<0.000000e+00> : vector<2x256xf32>
    %2 = tpu.matmul %0, %1, %cst {dimension_numbers = #tpu.dot_dimension_numbers<[1], [0], [0], [1], [0, 0, 1, 1], [], []>} : vector<2x8xf32>, vector<8x256xf32>, vector<2x256xf32> -> vector<2x256xf32>
    %c0_3 = arith.constant 0 : index
    %c0_4 = arith.constant 0 : index
    %3 = vector.load %arg3[%c0_3, %c0_4] : memref<1x256xf32, #tpu.memory_space<vmem>>, vector<1x256xf32>
    %4 = vector.broadcast %3 : vector<1x256xf32> to vector<2x256xf32>
    %5 = arith.addf %2, %4 : vector<2x256xf32>
    %cst_5 = arith.constant 0.000000e+00 : f32
    %6 = vector.broadcast %cst_5 : f32 to vector<2x256xf32>
    %7 = arith.maximumf %5, %6 : vector<2x256xf32>
    %8 = arith.truncf %7 : vector<2x256xf32> to vector<2x256xbf16>
    %c0_6 = arith.constant 0 : index
    %c0_7 = arith.constant 0 : index
    %9 = vector.load %arg4[%c0_6, %c0_7] : memref<256x128xbf16, #tpu.memory_space<vmem>>, vector<256x128xbf16>
    %cst_8 = arith.constant dense<0.000000e+00> : vector<2x128xf32>
    %10 = tpu.matmul %8, %9, %cst_8 {dimension_numbers = #tpu.dot_dimension_numbers<[1], [0], [0], [1], [0, 0, 1, 1], [], []>} : vector<2x256xbf16>, vector<256x128xbf16>, vector<2x128xf32> -> vector<2x128xf32>
    %c0_9 = arith.constant 0 : index
    %c0_10 = arith.constant 0 : index
    %11 = vector.load %arg5[%c0_9, %c0_10] : memref<1x128xf32, #tpu.memory_space<vmem>>, vector<1x128xf32>
    %12 = vector.broadcast %11 : vector<1x128xf32> to vector<2x128xf32>
    %13 = arith.addf %10, %12 : vector<2x128xf32>
    %cst_11 = arith.constant 0.000000e+00 : f32
    %14 = vector.broadcast %cst_11 : f32 to vector<2x128xf32>
    %15 = arith.maximumf %13, %14 : vector<2x128xf32>
    %16 = arith.truncf %15 : vector<2x128xf32> to vector<2x128xbf16>
    %c0_12 = arith.constant 0 : index
    %c0_13 = arith.constant 0 : index
    %17 = vector.load %arg6[%c0_12, %c0_13] : memref<128x4xbf16, #tpu.memory_space<vmem>>, vector<128x4xbf16>
    %cst_14 = arith.constant dense<0.000000e+00> : vector<2x4xf32>
    %18 = tpu.matmul %16, %17, %cst_14 {dimension_numbers = #tpu.dot_dimension_numbers<[1], [0], [0], [1], [0, 0, 1, 1], [], []>} : vector<2x128xbf16>, vector<128x4xbf16>, vector<2x4xf32> -> vector<2x4xf32>
    %c0_15 = arith.constant 0 : index
    %c0_16 = arith.constant 0 : index
    %19 = vector.load %arg7[%c0_15, %c0_16] : memref<1x4xf32, #tpu.memory_space<vmem>>, vector<1x4xf32>
    %20 = vector.broadcast %19 : vector<1x4xf32> to vector<2x4xf32>
    %21 = arith.addf %18, %20 : vector<2x4xf32>
    %c0_17 = arith.constant 0 : index
    %c0_18 = arith.constant 0 : index
    %22 = vector.load %arg8[%c0_17, %c0_18] : memref<2x4xf32, #tpu.memory_space<vmem>>, vector<2x4xf32>
    tpu.vector_store %arg8[%c0_17, %c0_18], %21 {strides = array<i32>} : memref<2x4xf32, #tpu.memory_space<vmem>>, vector<2x4xf32>,
    return
  }
  func.func @transform_0(%arg0: i32) -> (i32, i32) {
    %c0_i32 = arith.constant 0 : i32
    %c0_i32_0 = arith.constant 0 : i32
    return %arg0, %c0_i32 : i32, i32
  }
  func.func @transform_1(%arg0: i32) -> (i32, i32) {
    %c0_i32 = arith.constant 0 : i32
    %c0_i32_0 = arith.constant 0 : i32
    %c0_i32_1 = arith.constant 0 : i32
    return %c0_i32, %c0_i32_0 : i32, i32
  }
  func.func @transform_2(%arg0: i32) -> (i32, i32) {
    %c0_i32 = arith.constant 0 : i32
    %c0_i32_0 = arith.constant 0 : i32
    %c0_i32_1 = arith.constant 0 : i32
    return %c0_i32, %c0_i32_0 : i32, i32
  }
  func.func @transform_3(%arg0: i32) -> (i32, i32) {
    %c0_i32 = arith.constant 0 : i32
    %c0_i32_0 = arith.constant 0 : i32
    %c0_i32_1 = arith.constant 0 : i32
    return %c0_i32, %c0_i32_0 : i32, i32
  }
  func.func @transform_4(%arg0: i32) -> (i32, i32) {
    %c0_i32 = arith.constant 0 : i32
    %c0_i32_0 = arith.constant 0 : i32
    %c0_i32_1 = arith.constant 0 : i32
    return %c0_i32, %c0_i32_0 : i32, i32
  }
  func.func @transform_5(%arg0: i32) -> (i32, i32) {
    %c0_i32 = arith.constant 0 : i32
    %c0_i32_0 = arith.constant 0 : i32
    %c0_i32_1 = arith.constant 0 : i32
    return %c0_i32, %c0_i32_0 : i32, i32
  }
  func.func @transform_6(%arg0: i32) -> (i32, i32) {
    %c0_i32 = arith.constant 0 : i32
    %c0_i32_0 = arith.constant 0 : i32
    %c0_i32_1 = arith.constant 0 : i32
    return %c0_i32, %c0_i32_0 : i32, i32
  }
  func.func @transform_7(%arg0: i32) -> (i32, i32) {
    %c0_i32 = arith.constant 0 : i32
    %c0_i32_0 = arith.constant 0 : i32
    return %arg0, %c0_i32 : i32, i32
  }
}

</mosaic_0001>

<llo_original>
// kernel: qnetwork_forward.1
$region0: #{qnetwork_forward.1}
  #allocation0 [shape = 'u32[]', space=smem, size = 0x4, offset = 0x4, fixed_abs, tag = 'smem constant byte address 0x4 - core index']
  #allocation1 [shape = 'u32[144,128]{1,0:T(1,128)}', space=vmem, size = 0x12000, scoped, tag = 'internal scratch']
  %s0 = inlined_call_operand.vmem [shape: f32[2,8], index: 0, kind: input, shape index: {}]
  %s1 = inlined_call_operand.vmem [shape: f32[8,256], index: 1, kind: input, shape index: {}]
  %s2 = inlined_call_operand.vmem [shape: f32[1,256], index: 2, kind: input, shape index: {}]
  %s3 = inlined_call_operand.hbm [shape: bf16[256,128], index: 3, kind: input, shape index: {}]
  %s4 = inlined_call_operand.vmem [shape: f32[1,128], index: 4, kind: input, shape index: {}]
  %s5 = inlined_call_operand.vmem [shape: bf16[128,4], index: 5, kind: input, shape index: {}]
  %s6 = inlined_call_operand.vmem [shape: f32[1,4], index: 6, kind: input, shape index: {}]
  %s7 = inlined_call_operand.hbm [shape: f32[2,4], index: 7, kind: output, shape index: {}]
  %s8 = sld [smem:[#allocation0]]
  $region42: #{qnetwork_forward.1} parent=0
    _
  %s10 = ssub.s32 1, %s8
  %s11 = scalar_select 0, %s10, %s8
  $region1: #{qnetwork_forward.1} parent=0
    #allocation2 [shape = 'u8[65536]{0}', space=vmem, size = 0x10000, scoped, tag = 'input window, operand 3, single buffered']
    #allocation3 [shape = 's32[1]{0}', space=sflag, size = 0x4, scoped, tag = 'scoped memory for qnetwork_forward.1']
    #allocation4 [shape = 's32[1]{0}', space=sflag, size = 0x4, scoped, tag = 'scoped memory for qnetwork_forward.1']
    #allocation5 [shape = 'u8[1024]{0}', space=vmem, size = 0x400, scoped, tag = 'output window, operand 0, single buffered']
    %12 = vsyncpa [#allocation3], 0
    %13 = vsyncpa [#allocation4], 0
    // Predicated region
    $region2: #{qnetwork_forward.1} parent=1 // pred_check
      _
    $region3: #{qnetwork_forward.1} parent=1 // pred_check_branch
      %15 = sbr.rel (0) target = $region5
    $region4: #{qnetwork_forward.1} parent=1 // pred_region
      _
    $region5: #{qnetwork_forward.1} parent=1 // pred_fallthru
      _
    // Predicated region
    $region6: #{qnetwork_forward.1} parent=1 // pred_check
      _
    $region7: #{qnetwork_forward.1} parent=1 // pred_check_branch
      %17 = sbr.rel (0) target = $region9
    $region8: #{qnetwork_forward.1} parent=1 // pred_region
      _
    $region9: #{qnetwork_forward.1} parent=1 // pred_fallthru
      _
    // Predicated region
    $region10: #{qnetwork_forward.1} parent=1 // pred_check
      _
    $region11: #{qnetwork_forward.1} parent=1 // pred_check_branch
      %19 = sbr.rel (0) target = $region13
    $region12: #{qnetwork_forward.1} parent=1 // pred_region
      _
    $region13: #{qnetwork_forward.1} parent=1 // pred_fallthru
      _
    // Predicated region
    $region14: #{qnetwork_forward.1} parent=1 // pred_check
      _
    $region15: #{qnetwork_forward.1} parent=1 // pred_check_branch
      %21 = sbr.rel (0) target = $region17
    $region16: #{qnetwork_forward.1} parent=1 // pred_region
      %s23 = ssub.s32 2048, 2048
      %24 = vsyncadd [#allocation3], %s23
      %s25 = sshll.u32 [#allocation2], 4
      %s26 = int_to_ptr.vmem [resolvable:$true] %s25
      %31 = dma.hbm_to_vmem [thread:$0]  %s3, 2048, %s26, [#allocation3], 64, 64, 4
    $region17: #{qnetwork_forward.1} parent=1 // pred_fallthru
      _
    // Predicated region
    $region18: #{qnetwork_forward.1} parent=1 // pred_check
      _
    $region19: #{qnetwork_forward.1} parent=1 // pred_check_branch
      %33 = sbr.rel (0) target = $region21
    $region20: #{qnetwork_forward.1} parent=1 // pred_region
      _
    $region21: #{qnetwork_forward.1} parent=1 // pred_fallthru
      _
    // Predicated region
    $region22: #{qnetwork_forward.1} parent=1 // pred_check
      _
    $region23: #{qnetwork_forward.1} parent=1 // pred_check_branch
      %35 = sbr.rel (0) target = $region25
    $region24: #{qnetwork_forward.1} parent=1 // pred_region
      _
    $region25: #{qnetwork_forward.1} parent=1 // pred_fallthru
      _
    // Predicated region
    $region26: #{qnetwork_forward.1} parent=1 // pred_check
      _
    $region27: #{qnetwork_forward.1} parent=1 // pred_check_branch
      %37 = sbr.rel (0) target = $region29
    $region28: #{qnetwork_forward.1} parent=1 // pred_region
      _
    $region29: #{qnetwork_forward.1} parent=1 // pred_fallthru
      _
    // Predicated region
    $region30: #{qnetwork_forward.1} parent=1 // pred_check
      _
    $region31: #{qnetwork_forward.1} parent=1 // pred_check_branch
      %39 = sbr.rel (0) target = $region33
    $region32: #{qnetwork_forward.1} parent=1 // pred_region
      %40 = dma.done [#allocation3], 2048
    $region33: #{qnetwork_forward.1} parent=1 // pred_fallthru
      _
    %v42 = vld [vmem:[%s0] sm:$0x3]
    %v43 = vld [vmem:[%s1] sm:$0xff]
    %v44 = vld [vmem:[%s1 + $0x8] sm:$0xff]
    %v45 = vld [vmem:[%s2] sm:$0x3]
    %v47 = vlaneseq
    %v48 = vshrl.u32 %v47, 7
    %v49 = vsub.s32 0, %v48
    %v50 = vrot.slane %v45, %v49
    %v51 = vlaneseq
    %v52 = vshrl.u32 %v51, 7
    %v53 = vsub.s32 1, %v52
    %v54 = vrot.slane %v45, %v53
    %vm57 = vcmask 64512
    %v59 = vsel %vm57, %v42, 0
    %61 = vmatprep.subr.mxu0 0.0
    %62 = vmatpush1.msra.mxu0 0.0
    %63 = vmatprep.subr.mxu0 0.0
    %64 = vmatpush1.msra.mxu0 0.0
    %65 = vmatprep.subr.mxu0 0.0
    %66 = vmatpush1.msra.mxu0 0.0
    %67 = vmatprep.subr.mxu0 0.0
    %68 = vmatpush1.msra.mxu0 0.0
    %69 = vmatprep.subr.mxu0 0.0
    %70 = vmatpush1.msra.mxu0 0.0
    %71 = vmatprep.subr.mxu0 0.0
    %72 = vmatpush1.msra.mxu0 0.0
    %73 = vmatprep.subr.mxu0 0.0
    %74 = vmatpush1.msra.mxu0 0.0
    %75 = vmatprep.subr.mxu0 0.0
    %76 = vmatpush1.msra.mxu0 0.0
    %77 = vmatprep.subr.mxu0 0.0
    %78 = vmatpush1.msra.mxu0 0.0
    %79 = vmatprep.subr.mxu0 0.0
    %80 = vmatpush1.msra.mxu0 0.0
    %81 = vmatprep.subr.mxu0 0.0
    %82 = vmatpush1.msra.mxu0 0.0
    %83 = vmatprep.subr.mxu0 0.0
    %84 = vmatpush1.msra.mxu0 0.0
    %85 = vmatprep.subr.mxu0 0.0
    %86 = vmatpush1.msra.mxu0 0.0
    %87 = vmatprep.subr.mxu0 0.0
    %88 = vmatpush1.msra.mxu0 0.0
    %89 = vmatprep.subr.mxu0 0.0
    %90 = vmatpush1.msra.mxu0 0.0
    %91 = vmatprep.subr.mxu0 %v44
    %92 = vmatpush1.msra.mxu0 %v43
    %93 = vmatprep.subr.mxu0 0.0
    %94 = vmatpush2.msra.mxu0 0.0
    %95 = vmatprep.subr.mxu0 0.0
    %96 = vmatpush2.msra.mxu0 0.0
    %97 = vmatprep.subr.mxu0 0.0
    %98 = vmatpush2.msra.mxu0 0.0
    %99 = vmatprep.subr.mxu0 0.0
    %100 = vmatpush2.msra.mxu0 0.0
    %101 = vmatprep.subr.mxu0 0.0
    %102 = vmatpush2.msra.mxu0 0.0
    %103 = vmatprep.subr.mxu0 0.0
    %104 = vmatpush2.msra.mxu0 0.0
    %105 = vmatprep.subr.mxu0 0.0
    %106 = vmatpush2.msra.mxu0 0.0
    %107 = vmatprep.subr.mxu0 0.0
    %108 = vmatpush2.msra.mxu0 0.0
    %109 = vmatprep.subr.mxu0 0.0
    %110 = vmatpush2.msra.mxu0 0.0
    %111 = vmatprep.subr.mxu0 0.0
    %112 = vmatpush2.msra.mxu0 0.0
    %113 = vmatprep.subr.mxu0 0.0
    %114 = vmatpush2.msra.mxu0 0.0
    %115 = vmatprep.subr.mxu0 0.0
    %116 = vmatpush2.msra.mxu0 0.0
    %117 = vmatprep.subr.mxu0 0.0
    %118 = vmatpush2.msra.mxu0 0.0
    %119 = vmatprep.subr.mxu0 0.0
    %120 = vmatpush2.msra.mxu0 0.0
    %121 = vmatprep.subr.mxu0 0.0
    %122 = vmatpush2.msra.mxu0 0.0
    %123 = vmatprep.subr.mxu0 0.0
    %124 = vmatpush2.msra.mxu0 0.0
    %125 = vmatprep.mubr.f32.mxu0 0.0
    %126 = vmatmul.mubr.f32.gmra.mxu0 %v59
    %v127 = vpop.f32.mrf.mxu0
    %v128 = vadd.f32 %v50, %v127
    %v129 = vpop.f32.mrf.mxu0
    %v130 = vadd.f32 %v54, %v129
    %131 = vdwg.mxu0
    %v132 = vmax.f32 %v128, 0.0
    %v133 = vmax.f32 %v130, 0.0
    %v134 = vpack.c.bf16 %v132, %v132
    %v135 = vpack.c.bf16 %v133, %v133
    %v136 = vld [vmem:[#allocation2] sm:$0xf]
    %v137 = vld [vmem:[#allocation2 + $0x4] sm:$0xf]
    %v138 = vld [vmem:[#allocation2 + $0x8] sm:$0xf]
    %v139 = vld [vmem:[#allocation2 + $0xc] sm:$0xf]
    %v140 = vld [vmem:[#allocation2 + $0x10] sm:$0xf]
    %v141 = vld [vmem:[#allocation2 + $0x14] sm:$0xf]
    %v142 = vld [vmem:[#allocation2 + $0x18] sm:$0xf]
    %v143 = vld [vmem:[#allocation2 + $0x1c] sm:$0xf]
    %v144 = vld [vmem:[#allocation2 + $0x20] sm:$0xf]
    %v145 = vld [vmem:[#allocation2 + $0x24] sm:$0xf]
    %v146 = vld [vmem:[#allocation2 + $0x28] sm:$0xf]
    %v147 = vld [vmem:[#allocation2 + $0x2c] sm:$0xf]
    %v148 = vld [vmem:[#allocation2 + $0x30] sm:$0xf]
    %v149 = vld [vmem:[#allocation2 + $0x34] sm:$0xf]
    %v150 = vld [vmem:[#allocation2 + $0x38] sm:$0xf]
    %v151 = vld [vmem:[#allocation2 + $0x3c] sm:$0xf]
    %v152 = vld [vmem:[#allocation2 + $0x40] sm:$0xf]
    %v153 = vld [vmem:[#allocation2 + $0x44] sm:$0xf]
    %v154 = vld [vmem:[#allocation2 + $0x48] sm:$0xf]
    %v155 = vld [vmem:[#allocation2 + $0x4c] sm:$0xf]
    %v156 = vld [vmem:[#allocation2 + $0x50] sm:$0xf]
    %v157 = vld [vmem:[#allocation2 + $0x54] sm:$0xf]
    %v158 = vld [vmem:[#allocation2 + $0x58] sm:$0xf]
    %v159 = vld [vmem:[#allocation2 + $0x5c] sm:$0xf]
    %v160 = vld [vmem:[#allocation2 + $0x60] sm:$0xf]
    %v161 = vld [vmem:[#allocation2 + $0x64] sm:$0xf]
    %v162 = vld [vmem:[#allocation2 + $0x68] sm:$0xf]
    %v163 = vld [vmem:[#allocation2 + $0x6c] sm:$0xf]
    %v164 = vld [vmem:[#allocation2 + $0x70] sm:$0xf]
    %v165 = vld [vmem:[#allocation2 + $0x74] sm:$0xf]
    %v166 = vld [vmem:[#allocation2 + $0x78] sm:$0xf]
    %v167 = vld [vmem:[#allocation2 + $0x7c] sm:$0xf]
    %v168 = vld [vmem:[%s4] sm:$0x1]
    %v170 = vlaneseq
    %v171 = vshrl.u32 %v170, 7
    %v172 = vsub.s32 0, %v171
    %v173 = vrot.slane %v168, %v172
    %v207 = vunpack.c.l.b16 %v136
    %v208 = vunpack.c.l.b16 %v137
    %v209 = vunpack.c.l.b16 %v138
    %v210 = vunpack.c.l.b16 %v139
    %v211 = vunpack.c.l.b16 %v140
    %v212 = vunpack.c.l.b16 %v141
    %v213 = vunpack.c.l.b16 %v142
    %v214 = vunpack.c.l.b16 %v143
    %v215 = vunpack.c.l.b16 %v144
    %v216 = vunpack.c.l.b16 %v145
    %v217 = vunpack.c.l.b16 %v146
    %v218 = vunpack.c.l.b16 %v147
    %v219 = vunpack.c.l.b16 %v148
    %v220 = vunpack.c.l.b16 %v149
    %v221 = vunpack.c.l.b16 %v150
    %v222 = vunpack.c.l.b16 %v151
    %v223 = vunpack.c.l.b16 %v152
    %v224 = vunpack.c.l.b16 %v153
    %v225 = vunpack.c.l.b16 %v154
    %v226 = vunpack.c.l.b16 %v155
    %v227 = vunpack.c.l.b16 %v156
    %v228 = vunpack.c.l.b16 %v157
    %v229 = vunpack.c.l.b16 %v158
    %v230 = vunpack.c.l.b16 %v159
    %v231 = vunpack.c.l.b16 %v160
    %v232 = vunpack.c.l.b16 %v161
    %v233 = vunpack.c.l.b16 %v162
    %v234 = vunpack.c.l.b16 %v163
    %v235 = vunpack.c.l.b16 %v164
    %v236 = vunpack.c.l.b16 %v165
    %v237 = vunpack.c.l.b16 %v166
    %v238 = vunpack.c.l.b16 %v167
    %v239 = vpack.c.b16 %v208, %v207
    %v240 = vpack.c.b16 %v210, %v209
    %v241 = vpack.c.b16 %v212, %v211
    %v242 = vpack.c.b16 %v214, %v213
    %v243 = vpack.c.b16 %v216, %v215
    %v244 = vpack.c.b16 %v218, %v217
    %v245 = vpack.c.b16 %v220, %v219
    %v246 = vpack.c.b16 %v222, %v221
    %v247 = vpack.c.b16 %v224, %v223
    %v248 = vpack.c.b16 %v226, %v225
    %v249 = vpack.c.b16 %v228, %v227
    %v250 = vpack.c.b16 %v230, %v229
    %v251 = vpack.c.b16 %v232, %v231
    %v252 = vpack.c.b16 %v234, %v233
    %v253 = vpack.c.b16 %v236, %v235
    %v254 = vpack.c.b16 %v238, %v237
    %271 = vmatprep.subr.bf16.mxu0 0
    %272 = vmatpush1.bf16.msra.mxu0 %v246
    %273 = vmatprep.subr.bf16.mxu0 0
    %274 = vmatpush1.bf16.msra.mxu0 %v245
    %275 = vmatprep.subr.bf16.mxu0 0
    %276 = vmatpush1.bf16.msra.mxu0 %v244
    %277 = vmatprep.subr.bf16.mxu0 0
    %278 = vmatpush1.bf16.msra.mxu0 %v243
    %279 = vmatprep.subr.bf16.mxu0 0
    %280 = vmatpush1.bf16.msra.mxu0 %v242
    %281 = vmatprep.subr.bf16.mxu0 0
    %282 = vmatpush1.bf16.msra.mxu0 %v241
    %283 = vmatprep.subr.bf16.mxu0 0
    %284 = vmatpush1.bf16.msra.mxu0 %v240
    %285 = vmatprep.subr.bf16.mxu0 0
    %286 = vmatpush1.bf16.msra.mxu0 %v239
    %287 = vmatprep.subr.bf16.mxu0 0
    %288 = vmatpush2.bf16.msra.mxu0 %v254
    %289 = vmatprep.subr.bf16.mxu0 0
    %290 = vmatpush2.bf16.msra.mxu0 %v253
    %291 = vmatprep.subr.bf16.mxu0 0
    %292 = vmatpush2.bf16.msra.mxu0 %v252
    %293 = vmatprep.subr.bf16.mxu0 0
    %294 = vmatpush2.bf16.msra.mxu0 %v251
    %295 = vmatprep.subr.bf16.mxu0 0
    %296 = vmatpush2.bf16.msra.mxu0 %v250
    %297 = vmatprep.subr.bf16.mxu0 0
    %298 = vmatpush2.bf16.msra.mxu0 %v249
    %299 = vmatprep.subr.bf16.mxu0 0
    %300 = vmatpush2.bf16.msra.mxu0 %v248
    %301 = vmatprep.subr.bf16.mxu0 0
    %302 = vmatpush2.bf16.msra.mxu0 %v247
    %303 = vmatprep.mubr.bf16.mxu0 %v135
    %304 = vmatmul.mubr.bf16.gmra.mxu0 %v134
    %v305 = vpop.f32.mrf.mxu0
    %v306 = vadd.f32 %v173, %v305
    %v307 = vpop.f32.mrf.mxu0
    %v308 = vpop.f32.mrf.mxu0
    %v309 = vpop.f32.mrf.mxu0
    %310 = vdwg.mxu0
    %v311 = vmax.f32 %v306, 0.0
    %v312 = vpack.c.bf16 %v311, %v311
    %v313 = vld [vmem:[%s5] sm:$0xf]
    %v314 = vld [vmem:[%s5 + $0x4] sm:$0xf]
    %v315 = vld [vmem:[%s5 + $0x8] sm:$0xf]
    %v316 = vld [vmem:[%s5 + $0xc] sm:$0xf]
    %v317 = vld [vmem:[%s5 + $0x10] sm:$0xf]
    %v318 = vld [vmem:[%s5 + $0x14] sm:$0xf]
    %v319 = vld [vmem:[%s5 + $0x18] sm:$0xf]
    %v320 = vld [vmem:[%s5 + $0x1c] sm:$0xf]
    %v321 = vld [vmem:[%s5 + $0x20] sm:$0xf]
    %v322 = vld [vmem:[%s5 + $0x24] sm:$0xf]
    %v323 = vld [vmem:[%s5 + $0x28] sm:$0xf]
    %v324 = vld [vmem:[%s5 + $0x2c] sm:$0xf]
    %v325 = vld [vmem:[%s5 + $0x30] sm:$0xf]
    %v326 = vld [vmem:[%s5 + $0x34] sm:$0xf]
    %v327 = vld [vmem:[%s5 + $0x38] sm:$0xf]
    %v328 = vld [vmem:[%s5 + $0x3c] sm:$0xf]
    %v329 = vld [vmem:[%s6] sm:$0x1]
    %v331 = vlaneseq
    %v332 = vshrl.u32 %v331, 7
    %v333 = vsub.s32 0, %v332
    %v334 = vrot.slane %v329, %v333
    %v352 = vunpack.c.l.b16 %v313
    %v353 = vunpack.c.l.b16 %v314
    %v354 = vunpack.c.l.b16 %v315
    %v355 = vunpack.c.l.b16 %v316
    %v356 = vunpack.c.l.b16 %v317
    %v357 = vunpack.c.l.b16 %v318
    %v358 = vunpack.c.l.b16 %v319
    %v359 = vunpack.c.l.b16 %v320
    %v360 = vunpack.c.l.b16 %v321
    %v361 = vunpack.c.l.b16 %v322
    %v362 = vunpack.c.l.b16 %v323
    %v363 = vunpack.c.l.b16 %v324
    %v364 = vunpack.c.l.b16 %v325
    %v365 = vunpack.c.l.b16 %v326
    %v366 = vunpack.c.l.b16 %v327
    %v367 = vunpack.c.l.b16 %v328
    %v368 = vpack.c.b16 %v353, %v352
    %v369 = vpack.c.b16 %v355, %v354
    %v370 = vpack.c.b16 %v357, %v356
    %v371 = vpack.c.b16 %v359, %v358
    %v372 = vpack.c.b16 %v361, %v360
    %v373 = vpack.c.b16 %v363, %v362
    %v374 = vpack.c.b16 %v365, %v364
    %v375 = vpack.c.b16 %v367, %v366
    %384 = vmatprep.subr.bf16.mxu0 0
    %385 = vmatpush1.bf16.msra.mxu0 %v375
    %386 = vmatprep.subr.bf16.mxu0 0
    %387 = vmatpush1.bf16.msra.mxu0 %v374
    %388 = vmatprep.subr.bf16.mxu0 0
    %389 = vmatpush1.bf16.msra.mxu0 %v373
    %390 = vmatprep.subr.bf16.mxu0 0
    %391 = vmatpush1.bf16.msra.mxu0 %v372
    %392 = vmatprep.subr.bf16.mxu0 0
    %393 = vmatpush1.bf16.msra.mxu0 %v371
    %394 = vmatprep.subr.bf16.mxu0 0
    %395 = vmatpush1.bf16.msra.mxu0 %v370
    %396 = vmatprep.subr.bf16.mxu0 0
    %397 = vmatpush1.bf16.msra.mxu0 %v369
    %398 = vmatprep.subr.bf16.mxu0 0
    %399 = vmatpush1.bf16.msra.mxu0 %v368
    %400 = vmatprep.subr.bf16.mxu0 0
    %401 = vmatpush2.bf16.msra.mxu0 0
    %402 = vmatprep.subr.bf16.mxu0 0
    %403 = vmatpush2.bf16.msra.mxu0 0
    %404 = vmatprep.subr.bf16.mxu0 0
    %405 = vmatpush2.bf16.msra.mxu0 0
    %406 = vmatprep.subr.bf16.mxu0 0
    %407 = vmatpush2.bf16.msra.mxu0 0
    %408 = vmatprep.subr.bf16.mxu0 0
    %409 = vmatpush2.bf16.msra.mxu0 0
    %410 = vmatprep.subr.bf16.mxu0 0
    %411 = vmatpush2.bf16.msra.mxu0 0
    %412 = vmatprep.subr.bf16.mxu0 0
    %413 = vmatpush2.bf16.msra.mxu0 0
    %414 = vmatprep.subr.bf16.mxu0 0
    %415 = vmatpush2.bf16.msra.mxu0 0
    %416 = vmatprep.mubr.bf16.mxu0 0
    %417 = vmatmul.mubr.bf16.gmra.mxu0 %v312
    %v418 = vpop.f32.mrf.mxu0
    %v419 = vadd.f32 %v334, %v418
    %v420 = vpop.f32.mrf.mxu0
    %v421 = vpop.f32.mrf.mxu0
    %v422 = vpop.f32.mrf.mxu0
    %423 = vdwg.mxu0
    %vm424 = vcmask 25600
    %425 = vst.msk [vmem:[#allocation5] sm:$0x3] %vm424, %v419
    // Predicated region
    $region34: #{qnetwork_forward.1} parent=1 // pred_check
      _
    $region35: #{qnetwork_forward.1} parent=1 // pred_check_branch
      %427 = sbr.rel (0) target = $region37
    $region36: #{qnetwork_forward.1} parent=1 // pred_region
      %s429 = ssub.s32 32, 32
      %430 = vsyncadd [#allocation4], %s429
      %s432 = sshll.u32 [#allocation5], 4
      %s433 = int_to_ptr.vmem [resolvable:$true] %s432
      %435 = dma.vmem_to_hbm [thread:$0]  %s433, 32, %s7, [#allocation4]
    $region37: #{qnetwork_forward.1} parent=1 // pred_fallthru
      _
    // Predicated region
    $region38: #{qnetwork_forward.1} parent=1 // pred_check
      _
    $region39: #{qnetwork_forward.1} parent=1 // pred_check_branch
      %437 = sbr.rel (0) target = $region41
    $region40: #{qnetwork_forward.1} parent=1 // pred_region
      %438 = dma.done [#allocation4], 32
    $region41: #{qnetwork_forward.1} parent=1 // pred_fallthru
      _
    %439 = vsyncpa [#allocation3], 1
    %440 = vsyncpa [#allocation4], 1

</llo_original>
